<compile_context>
chip_gen: v5e
topology: v5e:2x2
jax: 0.10.0
libtpu: 0.0.40
codegen_flags: <defaults>
</compile_context>

<pallas_src>
import functools

import jax
import jax.numpy as jnp
from jax.experimental import pallas as pl
from jax.experimental.pallas import tpu as pltpu


def _mlp_kernel(x_ref, w0_ref, b0_ref, wh_ref, bh_ref, wo_ref, bo_ref, out_ref,
                *, n_stacked, out_as_reduction):
    """One batch tile of the full MLP forward; all weights resident in VMEM."""
    # First linear + ReLU (K = input_size is tiny; this matmul is latency-bound
    # on the MXU but negligible vs. the hidden-layer chain).
    h = jnp.dot(x_ref[...], w0_ref[...], preferred_element_type=jnp.float32)
    h = jnp.maximum(h + b0_ref[...], 0.0)

    # (n_hidden_layer - 1) hidden linears + ReLU.  n_stacked is a compile-time
    # constant -> static unroll; static leading-axis slices of wh_ref/bh_ref are
    # free, and the activation stays in registers between layers.
    for i in range(n_stacked):
        h = jnp.dot(h, wh_ref[i], preferred_element_type=jnp.float32)
        h = jnp.maximum(h + bh_ref[i], 0.0)

    # Output linear (no activation).
    if out_as_reduction:
        # output_size == 1: VPU broadcast-multiply + cross-lane reduce (XLU)
        # instead of a lane-sparse (N=1) MXU matmul.
        y = jnp.sum(h * wo_ref[...].T, axis=-1, keepdims=True)
    else:
        y = jnp.dot(h, wo_ref[...], preferred_element_type=jnp.float32)
    out_ref[...] = (y + bo_ref[...]).astype(out_ref.dtype)


def dnn_forward(x, params, *, block_batch=256):
    w0, b0, wh, bh, wo, bo = params
    B, I = x.shape
    H = w0.shape[1]
    O = wo.shape[1]
    L = wh.shape[0]                       # n_hidden_layer - 1

    # Degenerate depth (n_hidden_layer == 1): feed dummy stacked weights that
    # the kernel never reads (n_stacked == 0).
    if L == 0:
        wh = jnp.zeros((1, H, H), jnp.float32)
        bh = jnp.zeros((1, 1, H), jnp.float32)

    # Batch tile: whole batch, or a multiple of 8 (sublane rule).
    TB = min(block_batch, B)
    if TB != B:
        TB = max(8, (TB // 8) * 8)
    grid = (pl.cdiv(B, TB),)

    kernel = functools.partial(
        _mlp_kernel, n_stacked=L, out_as_reduction=(O == 1))

    def resident(arr):
        shape = arr.shape
        return pl.BlockSpec(shape, lambda i, _s=shape: (0,) * len(_s))

    flops = 2 * B * (I * H + L * H * H + H * O)
    bytes_accessed = 4 * (B * I + I * H + H
                          + L * (H * H + H) + H * O + O + B * O)
    cost = pl.CostEstimate(flops=flops, transcendentals=0,
                           bytes_accessed=bytes_accessed)

    return pl.pallas_call(
        kernel,
        out_shape=jax.ShapeDtypeStruct((B, O), jnp.float32),
        grid=grid,
        in_specs=[
            pl.BlockSpec((TB, I), lambda i: (i, 0)),   # batch-tiled input
            resident(w0), resident(b0),
            resident(wh), resident(bh),
            resident(wo), resident(bo),
        ],
        out_specs=pl.BlockSpec((TB, O), lambda i: (i, 0)),
        compiler_params=pltpu.CompilerParams(
            dimension_semantics=("parallel",)),        # v7x: shard batch tiles
        cost_estimate=cost,
    )(x, w0, b0, wh, bh, wo, bo)


def init_params(key, input_size=4, output_size=1, hidden=64, n_hidden_layer=5):
    """Deterministic synthetic parameters (shapes match the PyTorch module)."""
    keys = jax.random.split(key, 6)
    s = 0.1
    L = max(n_hidden_layer - 1, 0)
    w0 = jax.random.normal(keys[0], (input_size, hidden), jnp.float32) * s
    b0 = jax.random.normal(keys[1], (1, hidden), jnp.float32) * s
    wh = jax.random.normal(keys[2], (max(L, 1), hidden, hidden),
                           jnp.float32)[:L] * s
    bh = jax.random.normal(keys[3], (max(L, 1), 1, hidden),
                           jnp.float32)[:L] * s
    wo = jax.random.normal(keys[4], (hidden, output_size), jnp.float32) * s
    bo = jax.random.normal(keys[5], (1, output_size), jnp.float32) * s
    return w0, b0, wh, bh, wo, bo


def dnn_reference(x, params):
    """Pure-JAX reference of the same forward pass."""
    w0, b0, wh, bh, wo, bo = params
    h = jnp.maximum(x @ w0 + b0, 0.0)
    for i in range(wh.shape[0]):
        h = jnp.maximum(h @ wh[i] + bh[i], 0.0)
    return h @ wo + bo


if __name__ == "__main__":
    key = jax.random.PRNGKey(0)
    kx, kp = jax.random.split(key)

    # Small shapes consistent with the module (hidden_layer=64 default;
    # reduced depth/batch for a quick test).  block_batch=32 -> 2 batch tiles.
    batch, input_size, output_size, hidden, n_hidden_layer = 64, 4, 1, 64, 5

    x = jax.random.normal(kx, (batch, input_size), jnp.float32)
    params = init_params(kp, input_size, output_size, hidden, n_hidden_layer)

    out = dnn_forward(x, params, block_batch=32)
    out = jax.block_until_ready(out)

    ref = dnn_reference(x, params)
    assert out.shape == (batch, output_size)
    assert jnp.allclose(out, ref, atol=1e-5, rtol=1e-5)

    print("KERNEL_OK")
</pallas_src>

<mosaic_0001>
module attributes {stable_mosaic.version = 11 : i64} {
  func.func @_mlp_kernel(%arg0: i32, %arg1: memref<32x4xf32, #tpu.memory_space<vmem>>, %arg2: memref<4x64xf32, #tpu.memory_space<vmem>>, %arg3: memref<1x64xf32, #tpu.memory_space<vmem>>, %arg4: memref<4x64x64xf32, #tpu.memory_space<vmem>>, %arg5: memref<4x1x64xf32, #tpu.memory_space<vmem>>, %arg6: memref<64x1xf32, #tpu.memory_space<vmem>>, %arg7: memref<1x1xf32, #tpu.memory_space<vmem>>, %arg8: memref<32x1xf32, #tpu.memory_space<vmem>>) attributes {dimension_semantics = [#tpu.dimension_semantics<parallel>], iteration_bounds = array<i64: 2>, scalar_prefetch = 0 : i64, scratch_operands = 0 : i64, tpu.core_type = #tpu.core_type<tc>, window_params = [{transform_indices = @transform_0, window_bounds = array<i64: 32, 4>}, {pipeline_mode = #tpu.pipeline_mode<synchronous>, transform_indices = @transform_1, window_bounds = array<i64: 4, 64>}, {pipeline_mode = #tpu.pipeline_mode<synchronous>, transform_indices = @transform_2, window_bounds = array<i64: 1, 64>}, {pipeline_mode = #tpu.pipeline_mode<synchronous>, transform_indices = @transform_3, window_bounds = array<i64: 4, 64, 64>}, {pipeline_mode = #tpu.pipeline_mode<synchronous>, transform_indices = @transform_4, window_bounds = array<i64: 4, 1, 64>}, {pipeline_mode = #tpu.pipeline_mode<synchronous>, transform_indices = @transform_5, window_bounds = array<i64: 64, 1>}, {pipeline_mode = #tpu.pipeline_mode<synchronous>, transform_indices = @transform_6, window_bounds = array<i64: 1, 1>}, {transform_indices = @transform_7, window_bounds = array<i64: 32, 1>}]} {
    %c0 = arith.constant 0 : index
    %c0_0 = arith.constant 0 : index
    %0 = vector.load %arg1[%c0, %c0_0] : memref<32x4xf32, #tpu.memory_space<vmem>>, vector<32x4xf32>
    %c0_1 = arith.constant 0 : index
    %c0_2 = arith.constant 0 : index
    %1 = vector.load %arg2[%c0_1, %c0_2] : memref<4x64xf32, #tpu.memory_space<vmem>>, vector<4x64xf32>
    %cst = arith.constant dense<0.000000e+00> : vector<32x64xf32>
    %2 = tpu.matmul %0, %1, %cst {dimension_numbers = #tpu.dot_dimension_numbers<[1], [0], [0], [1], [0, 0, 1, 1], [], []>} : vector<32x4xf32>, vector<4x64xf32>, vector<32x64xf32> -> vector<32x64xf32>
    %c0_3 = arith.constant 0 : index
    %c0_4 = arith.constant 0 : index
    %3 = vector.load %arg3[%c0_3, %c0_4] : memref<1x64xf32, #tpu.memory_space<vmem>>, vector<1x64xf32>
    %4 = vector.broadcast %3 : vector<1x64xf32> to vector<32x64xf32>
    %5 = arith.addf %2, %4 : vector<32x64xf32>
    %cst_5 = arith.constant 0.000000e+00 : f32
    %6 = vector.broadcast %cst_5 : f32 to vector<32x64xf32>
    %7 = arith.maximumf %5, %6 : vector<32x64xf32>
    %c0_6 = arith.constant 0 : index
    %c0_7 = arith.constant 0 : index
    %c0_8 = arith.constant 0 : index
    %8 = vector.load %arg4[%c0_6, %c0_7, %c0_8] : memref<4x64x64xf32, #tpu.memory_space<vmem>>, vector<1x64x64xf32>
    %9 = vector.shape_cast %8 : vector<1x64x64xf32> to vector<64x64xf32>
    %cst_9 = arith.constant dense<0.000000e+00> : vector<32x64xf32>
    %10 = tpu.matmul %7, %9, %cst_9 {dimension_numbers = #tpu.dot_dimension_numbers<[1], [0], [0], [1], [0, 0, 1, 1], [], []>} : vector<32x64xf32>, vector<64x64xf32>, vector<32x64xf32> -> vector<32x64xf32>
    %c0_10 = arith.constant 0 : index
    %c0_11 = arith.constant 0 : index
    %c0_12 = arith.constant 0 : index
    %11 = vector.load %arg5[%c0_10, %c0_11, %c0_12] : memref<4x1x64xf32, #tpu.memory_space<vmem>>, vector<1x1x64xf32>
    %12 = vector.shape_cast %11 : vector<1x1x64xf32> to vector<1x64xf32>
    %13 = vector.broadcast %12 : vector<1x64xf32> to vector<32x64xf32>
    %14 = arith.addf %10, %13 : vector<32x64xf32>
    %cst_13 = arith.constant 0.000000e+00 : f32
    %15 = vector.broadcast %cst_13 : f32 to vector<32x64xf32>
    %16 = arith.maximumf %14, %15 : vector<32x64xf32>
    %c1 = arith.constant 1 : index
    %c0_14 = arith.constant 0 : index
    %c0_15 = arith.constant 0 : index
    %17 = vector.load %arg4[%c1, %c0_14, %c0_15] : memref<4x64x64xf32, #tpu.memory_space<vmem>>, vector<1x64x64xf32>
    %18 = vector.shape_cast %17 : vector<1x64x64xf32> to vector<64x64xf32>
    %cst_16 = arith.constant dense<0.000000e+00> : vector<32x64xf32>
    %19 = tpu.matmul %16, %18, %cst_16 {dimension_numbers = #tpu.dot_dimension_numbers<[1], [0], [0], [1], [0, 0, 1, 1], [], []>} : vector<32x64xf32>, vector<64x64xf32>, vector<32x64xf32> -> vector<32x64xf32>
    %c1_17 = arith.constant 1 : index
    %c0_18 = arith.constant 0 : index
    %c0_19 = arith.constant 0 : index
    %20 = vector.load %arg5[%c1_17, %c0_18, %c0_19] : memref<4x1x64xf32, #tpu.memory_space<vmem>>, vector<1x1x64xf32>
    %21 = vector.shape_cast %20 : vector<1x1x64xf32> to vector<1x64xf32>
    %22 = vector.broadcast %21 : vector<1x64xf32> to vector<32x64xf32>
    %23 = arith.addf %19, %22 : vector<32x64xf32>
    %cst_20 = arith.constant 0.000000e+00 : f32
    %24 = vector.broadcast %cst_20 : f32 to vector<32x64xf32>
    %25 = arith.maximumf %23, %24 : vector<32x64xf32>
    %c2 = arith.constant 2 : index
    %c0_21 = arith.constant 0 : index
    %c0_22 = arith.constant 0 : index
    %26 = vector.load %arg4[%c2, %c0_21, %c0_22] : memref<4x64x64xf32, #tpu.memory_space<vmem>>, vector<1x64x64xf32>
    %27 = vector.shape_cast %26 : vector<1x64x64xf32> to vector<64x64xf32>
    %cst_23 = arith.constant dense<0.000000e+00> : vector<32x64xf32>
    %28 = tpu.matmul %25, %27, %cst_23 {dimension_numbers = #tpu.dot_dimension_numbers<[1], [0], [0], [1], [0, 0, 1, 1], [], []>} : vector<32x64xf32>, vector<64x64xf32>, vector<32x64xf32> -> vector<32x64xf32>
    %c2_24 = arith.constant 2 : index
    %c0_25 = arith.constant 0 : index
    %c0_26 = arith.constant 0 : index
    %29 = vector.load %arg5[%c2_24, %c0_25, %c0_26] : memref<4x1x64xf32, #tpu.memory_space<vmem>>, vector<1x1x64xf32>
    %30 = vector.shape_cast %29 : vector<1x1x64xf32> to vector<1x64xf32>
    %31 = vector.broadcast %30 : vector<1x64xf32> to vector<32x64xf32>
    %32 = arith.addf %28, %31 : vector<32x64xf32>
    %cst_27 = arith.constant 0.000000e+00 : f32
    %33 = vector.broadcast %cst_27 : f32 to vector<32x64xf32>
    %34 = arith.maximumf %32, %33 : vector<32x64xf32>
    %c3 = arith.constant 3 : index
    %c0_28 = arith.constant 0 : index
    %c0_29 = arith.constant 0 : index
    %35 = vector.load %arg4[%c3, %c0_28, %c0_29] : memref<4x64x64xf32, #tpu.memory_space<vmem>>, vector<1x64x64xf32>
    %36 = vector.shape_cast %35 : vector<1x64x64xf32> to vector<64x64xf32>
    %cst_30 = arith.constant dense<0.000000e+00> : vector<32x64xf32>
    %37 = tpu.matmul %34, %36, %cst_30 {dimension_numbers = #tpu.dot_dimension_numbers<[1], [0], [0], [1], [0, 0, 1, 1], [], []>} : vector<32x64xf32>, vector<64x64xf32>, vector<32x64xf32> -> vector<32x64xf32>
    %c3_31 = arith.constant 3 : index
    %c0_32 = arith.constant 0 : index
    %c0_33 = arith.constant 0 : index
    %38 = vector.load %arg5[%c3_31, %c0_32, %c0_33] : memref<4x1x64xf32, #tpu.memory_space<vmem>>, vector<1x1x64xf32>
    %39 = vector.shape_cast %38 : vector<1x1x64xf32> to vector<1x64xf32>
    %40 = vector.broadcast %39 : vector<1x64xf32> to vector<32x64xf32>
    %41 = arith.addf %37, %40 : vector<32x64xf32>
    %cst_34 = arith.constant 0.000000e+00 : f32
    %42 = vector.broadcast %cst_34 : f32 to vector<32x64xf32>
    %43 = arith.maximumf %41, %42 : vector<32x64xf32>
    %c0_35 = arith.constant 0 : index
    %c0_36 = arith.constant 0 : index
    %44 = vector.load %arg6[%c0_35, %c0_36] : memref<64x1xf32, #tpu.memory_space<vmem>>, vector<64x1xf32>
    %45 = tpu.transpose %44, [1, 0] : vector<64x1xf32> -> vector<1x64xf32>
    %46 = vector.broadcast %45 : vector<1x64xf32> to vector<32x64xf32>
    %47 = arith.mulf %43, %46 : vector<32x64xf32>
    %cst_37 = arith.constant dense<0.000000e+00> : vector<32xf32>
    %48 = vector.multi_reduction <add>, %47, %cst_37 [1] : vector<32x64xf32> to vector<32xf32>
    %49 = vector.shape_cast %48 : vector<32xf32> to vector<32x1xf32>
    %c0_38 = arith.constant 0 : index
    %c0_39 = arith.constant 0 : index
    %50 = vector.load %arg7[%c0_38, %c0_39] : memref<1x1xf32, #tpu.memory_space<vmem>>, vector<1x1xf32>
    %51 = vector.broadcast %50 : vector<1x1xf32> to vector<32x1xf32>
    %52 = arith.addf %49, %51 : vector<32x1xf32>
    %c0_40 = arith.constant 0 : index
    %c0_41 = arith.constant 0 : index
    %53 = vector.load %arg8[%c0_40, %c0_41] : memref<32x1xf32, #tpu.memory_space<vmem>>, vector<32x1xf32>
    tpu.vector_store %arg8[%c0_40, %c0_41], %52 {strides = array<i32>} : memref<32x1xf32, #tpu.memory_space<vmem>>, vector<32x1xf32>,
    return
  }
  func.func @transform_0(%arg0: i32) -> (i32, i32) {
    %c0_i32 = arith.constant 0 : i32
    %c0_i32_0 = arith.constant 0 : i32
    return %arg0, %c0_i32 : i32, i32
  }
  func.func @transform_1(%arg0: i32) -> (i32, i32) {
    %c0_i32 = arith.constant 0 : i32
    %c0_i32_0 = arith.constant 0 : i32
    %c0_i32_1 = arith.constant 0 : i32
    return %c0_i32, %c0_i32_0 : i32, i32
  }
  func.func @transform_2(%arg0: i32) -> (i32, i32) {
    %c0_i32 = arith.constant 0 : i32
    %c0_i32_0 = arith.constant 0 : i32
    %c0_i32_1 = arith.constant 0 : i32
    return %c0_i32, %c0_i32_0 : i32, i32
  }
  func.func @transform_3(%arg0: i32) -> (i32, i32, i32) {
    %c0_i32 = arith.constant 0 : i32
    %c0_i32_0 = arith.constant 0 : i32
    %c0_i32_1 = arith.constant 0 : i32
    %c0_i32_2 = arith.constant 0 : i32
    return %c0_i32, %c0_i32_0, %c0_i32_1 : i32, i32, i32
  }
  func.func @transform_4(%arg0: i32) -> (i32, i32, i32) {
    %c0_i32 = arith.constant 0 : i32
    %c0_i32_0 = arith.constant 0 : i32
    %c0_i32_1 = arith.constant 0 : i32
    %c0_i32_2 = arith.constant 0 : i32
    return %c0_i32, %c0_i32_0, %c0_i32_1 : i32, i32, i32
  }
  func.func @transform_5(%arg0: i32) -> (i32, i32) {
    %c0_i32 = arith.constant 0 : i32
    %c0_i32_0 = arith.constant 0 : i32
    %c0_i32_1 = arith.constant 0 : i32
    return %c0_i32, %c0_i32_0 : i32, i32
  }
  func.func @transform_6(%arg0: i32) -> (i32, i32) {
    %c0_i32 = arith.constant 0 : i32
    %c0_i32_0 = arith.constant 0 : i32
    %c0_i32_1 = arith.constant 0 : i32
    return %c0_i32, %c0_i32_0 : i32, i32
  }
  func.func @transform_7(%arg0: i32) -> (i32, i32) {
    %c0_i32 = arith.constant 0 : i32
    %c0_i32_0 = arith.constant 0 : i32
    return %arg0, %c0_i32 : i32, i32
  }
}

</mosaic_0001>

<llo_original>
// kernel: tpu_custom_call.1
$region0: #{tpu_custom_call.1}
  #allocation0 [shape = 'u32[]', space=smem, size = 0x4, offset = 0x4, fixed_abs, tag = 'smem constant byte address 0x4 - core index']
  #allocation1 [shape = 'u32[72,128]{1,0:T(1,128)}', space=vmem, size = 0x9000, scoped, tag = 'internal scratch']
  #allocation2 [shape = 'f32[1,1]{1,0:T(1,128)S(1)}', space=vmem, size = 0x200, scoped, tag = 'scoped memory for tpu_custom_call.1']
  %s0 = inlined_call_operand.vmem [shape: f32[64,4], index: 0, kind: input, shape index: {}]
  %s1 = inlined_call_operand.vmem [shape: f32[4,64], index: 1, kind: input, shape index: {}]
  %s2 = inlined_call_operand.vmem [shape: f32[1,64], index: 2, kind: input, shape index: {}]
  %s3 = inlined_call_operand.hbm [shape: f32[4,64,64], index: 3, kind: input, shape index: {}]
  %s4 = inlined_call_operand.vmem [shape: f32[4,1,64], index: 4, kind: input, shape index: {}]
  %s5 = inlined_call_operand.vmem [shape: f32[64,1], index: 5, kind: input, shape index: {}]
  %s6 = inlined_call_operand.<no memory space> [shape: f32[1,1], index: 6, kind: input, shape index: {}]
  %s7 = inlined_call_operand.vmem [shape: f32[64,1], index: 7, kind: output, shape index: {}]
  %s8 = sld [smem:[#allocation0]]
  $region65: #{tpu_custom_call.1} parent=0
    _
  %s10 = ssub.s32 1, %s8
  %s11 = scalar_select 0, %s10, %s8
  %v12 = vstv %s6
  %13 = vst [vmem:[#allocation2] sm:$0x1] %v12
  $region1: #{tpu_custom_call.1} parent=0
    #allocation3 [shape = 'u8[131072]{0}', space=vmem, size = 0x20000, scoped, tag = 'input window, operand 3, single buffered']
    #allocation4 [shape = 's32[2]{0}', space=sflag, size = 0x8, scoped, tag = 'scoped memory for tpu_custom_call.1']
    %14 = vsyncpa [#allocation4], 0
    loop: start=0, step=1, limit=4
    $region2: #{tpu_custom_call.1} parent=1 // loop_pre_header
      _
    $region3: #{tpu_custom_call.1} parent=1 // loop_header
      %s16 = sphi 0, %s20
      %p17 = scmp.ge.s32.totalorder %s16, 4
      %s26 = sphi 0, %s28
      %s29 = sphi 0, %s26
      %s30 = sphi 0, %s29
      %s46 = sphi 0, %s30
      %s50 = sphi 0, %s50
      %s52 = sphi 0, %s50
      %s53 = sphi 0, %s52
      %s67 = sphi 0, %s53
      %s71 = sphi 0, %s71
      %s73 = sphi 0, %s71
      %s74 = sphi 0, %s73
      %s88 = sphi 0, %s74
      %s92 = sphi 0, %s92
      %s94 = sphi 0, %s92
      %s95 = sphi 0, %s94
      %s109 = sphi 0, %s95
      %s113 = sphi 0, %s113
      %s115 = sphi 0, %s113
      %s116 = sphi 0, %s115
      %s130 = sphi 0, %s116
      %s134 = sphi 0, %s134
      %s136 = sphi 0, %s134
      %s137 = sphi 0, %s136
      %s151 = sphi 0, %s137
      %s155 = sphi 0, %s155
      %s157 = sphi 0, %s155
      %s158 = sphi 0, %s157
      %s172 = sphi 0, %s158
      %s178 = sphi 0, %s180
      %s181 = sphi 0, %s178
      %s182 = sphi 0, %s181
      %s198 = sphi 0, %s182
    $region4: #{tpu_custom_call.1} parent=1 // loop_header_branch
      %19 = sbr.rel (%p17) target = $region8
    $region5: #{tpu_custom_call.1} parent=1 // loop_body
      %s21 = ssub.s32 %s16, 1
      %s22 = ssub.s32 %s16, 2
      %s23 = sadd.s32 %s16, 1
      %s24 = ssub.s32 %s16, %s23
      %p25 = scmp.eq.s32.totalorder %s24, 0
      %s27 = sadd.s32 %s26, 1
      %s28 = scalar_select %p25, %s26, %s27
      %p31 = pneg %p25
      %p32 = scmp.eq.s32.totalorder %s16, 1
      %p33 = por %p31, %p32
      %p34 = scmp.ne.s32.totalorder %s26, %s29
      %p35 = scmp.eq.s32.totalorder %s16, 0
      %p36 = por %p34, %p35
      %p37 = scmp.ne.s32.totalorder %s26, %s29
      %p38 = scmp.eq.s32.totalorder %s21, 1
      %p39 = por %p37, %p38
      %p40 = scmp.ne.s32.totalorder %s29, %s30
      %p41 = scmp.eq.s32.totalorder %s21, 0
      %p42 = por %p40, %p41
      %p43 = scmp.ne.s32.totalorder %s29, %s30
      %p44 = scmp.eq.s32.totalorder %s22, 1
      %p45 = por %p43, %p44
      %p47 = scmp.ne.s32.totalorder %s30, %s46
      %p48 = scmp.eq.s32.totalorder %s22, 0
      %p49 = por %p47, %p48
      %s51 = sadd.s32 %s50, 1
      %p54 = scmp.eq.s32.totalorder %s16, 1
      %p55 = scmp.ne.s32.totalorder %s50, %s52
      %p56 = scmp.eq.s32.totalorder %s16, 0
      %p57 = por %p55, %p56
      %p58 = scmp.ne.s32.totalorder %s50, %s52
      %p59 = scmp.eq.s32.totalorder %s21, 1
      %p60 = por %p58, %p59
      %p61 = scmp.ne.s32.totalorder %s52, %s53
      %p62 = scmp.eq.s32.totalorder %s21, 0
      %p63 = por %p61, %p62
      %p64 = scmp.ne.s32.totalorder %s52, %s53
      %p65 = scmp.eq.s32.totalorder %s22, 1
      %p66 = por %p64, %p65
      %p68 = scmp.ne.s32.totalorder %s53, %s67
      %p69 = scmp.eq.s32.totalorder %s22, 0
      %p70 = por %p68, %p69
      %s72 = sadd.s32 %s71, 1
      %p75 = scmp.eq.s32.totalorder %s16, 1
      %p76 = scmp.ne.s32.totalorder %s71, %s73
      %p77 = scmp.eq.s32.totalorder %s16, 0
      %p78 = por %p76, %p77
      %p79 = scmp.ne.s32.totalorder %s71, %s73
      %p80 = scmp.eq.s32.totalorder %s21, 1
      %p81 = por %p79, %p80
      %p82 = scmp.ne.s32.totalorder %s73, %s74
      %p83 = scmp.eq.s32.totalorder %s21, 0
      %p84 = por %p82, %p83
      %p85 = scmp.ne.s32.totalorder %s73, %s74
      %p86 = scmp.eq.s32.totalorder %s22, 1
      %p87 = por %p85, %p86
      %p89 = scmp.ne.s32.totalorder %s74, %s88
      %p90 = scmp.eq.s32.totalorder %s22, 0
      %p91 = por %p89, %p90
      %s93 = sadd.s32 %s92, 1
      %p96 = scmp.eq.s32.totalorder %s16, 1
      %p97 = scmp.ne.s32.totalorder %s92, %s94
      %p98 = scmp.eq.s32.totalorder %s16, 0
      %p99 = por %p97, %p98
      %p100 = scmp.ne.s32.totalorder %s92, %s94
      %p101 = scmp.eq.s32.totalorder %s21, 1
      %p102 = por %p100, %p101
      %p103 = scmp.ne.s32.totalorder %s94, %s95
      %p104 = scmp.eq.s32.totalorder %s21, 0
      %p105 = por %p103, %p104
      %p106 = scmp.ne.s32.totalorder %s94, %s95
      %p107 = scmp.eq.s32.totalorder %s22, 1
      %p108 = por %p106, %p107
      %p110 = scmp.ne.s32.totalorder %s95, %s109
      %p111 = scmp.eq.s32.totalorder %s22, 0
      %p112 = por %p110, %p111
      %s114 = sadd.s32 %s113, 1
      %p117 = scmp.eq.s32.totalorder %s16, 1
      %p118 = scmp.ne.s32.totalorder %s113, %s115
      %p119 = scmp.eq.s32.totalorder %s16, 0
      %p120 = por %p118, %p119
      %p121 = scmp.ne.s32.totalorder %s113, %s115
      %p122 = scmp.eq.s32.totalorder %s21, 1
      %p123 = por %p121, %p122
      %p124 = scmp.ne.s32.totalorder %s115, %s116
      %p125 = scmp.eq.s32.totalorder %s21, 0
      %p126 = por %p124, %p125
      %p127 = scmp.ne.s32.totalorder %s115, %s116
      %p128 = scmp.eq.s32.totalorder %s22, 1
      %p129 = por %p127, %p128
      %p131 = scmp.ne.s32.totalorder %s116, %s130
      %p132 = scmp.eq.s32.totalorder %s22, 0
      %p133 = por %p131, %p132
      %s135 = sadd.s32 %s134, 1
      %p138 = scmp.eq.s32.totalorder %s16, 1
      %p139 = scmp.ne.s32.totalorder %s134, %s136
      %p140 = scmp.eq.s32.totalorder %s16, 0
      %p141 = por %p139, %p140
      %p142 = scmp.ne.s32.totalorder %s134, %s136
      %p143 = scmp.eq.s32.totalorder %s21, 1
      %p144 = por %p142, %p143
      %p145 = scmp.ne.s32.totalorder %s136, %s137
      %p146 = scmp.eq.s32.totalorder %s21, 0
      %p147 = por %p145, %p146
      %p148 = scmp.ne.s32.totalorder %s136, %s137
      %p149 = scmp.eq.s32.totalorder %s22, 1
      %p150 = por %p148, %p149
      %p152 = scmp.ne.s32.totalorder %s137, %s151
      %p153 = scmp.eq.s32.totalorder %s22, 0
      %p154 = por %p152, %p153
      %s156 = sadd.s32 %s155, 1
      %p159 = scmp.eq.s32.totalorder %s16, 1
      %p160 = scmp.ne.s32.totalorder %s155, %s157
      %p161 = scmp.eq.s32.totalorder %s16, 0
      %p162 = por %p160, %p161
      %p163 = scmp.ne.s32.totalorder %s155, %s157
      %p164 = scmp.eq.s32.totalorder %s21, 1
      %p165 = por %p163, %p164
      %p166 = scmp.ne.s32.totalorder %s157, %s158
      %p167 = scmp.eq.s32.totalorder %s21, 0
      %p168 = por %p166, %p167
      %p169 = scmp.ne.s32.totalorder %s157, %s158
      %p170 = scmp.eq.s32.totalorder %s22, 1
      %p171 = por %p169, %p170
      %p173 = scmp.ne.s32.totalorder %s158, %s172
      %p174 = scmp.eq.s32.totalorder %s22, 0
      %p175 = por %p173, %p174
      %s176 = ssub.s32 %s16, %s23
      %p177 = scmp.eq.s32.totalorder %s176, 0
      %s179 = sadd.s32 %s178, 1
      %s180 = scalar_select %p177, %s178, %s179
      %p183 = pneg %p177
      %p184 = scmp.eq.s32.totalorder %s16, 1
      %p185 = por %p183, %p184
      %p186 = scmp.ne.s32.totalorder %s178, %s181
      %p187 = scmp.eq.s32.totalorder %s16, 0
      %p188 = por %p186, %p187
      %p189 = scmp.ne.s32.totalorder %s178, %s181
      %p190 = scmp.eq.s32.totalorder %s21, 1
      %p191 = por %p189, %p190
      %p192 = scmp.ne.s32.totalorder %s181, %s182
      %p193 = scmp.eq.s32.totalorder %s21, 0
      %p194 = por %p192, %p193
      %p195 = scmp.ne.s32.totalorder %s181, %s182
      %p196 = scmp.eq.s32.totalorder %s22, 1
      %p197 = por %p195, %p196
      %p199 = scmp.ne.s32.totalorder %s182, %s198
      %p200 = scmp.eq.s32.totalorder %s22, 0
      %p201 = por %p199, %p200
      %p202 = scmp.le.s32.totalorder 1, %s16
      %p203 = scmp.lt.s32.totalorder %s16, 3
      %p204 = pnand %p202, %p203
      %p205 = pneg %p204
      // Predicated region
      $region9: #{tpu_custom_call.1} parent=5 // pred_check
        _
      $region10: #{tpu_custom_call.1} parent=5 // pred_check_branch
        %207 = sbr.rel (%p204) target = $region12
      $region11: #{tpu_custom_call.1} parent=5 // pred_region
        %s208 = ssub.s32 %s16, 1
        // Predicated region
        $region13: #{tpu_custom_call.1} parent=11 // pred_check
          %p209 = pneg %p63
        $region14: #{tpu_custom_call.1} parent=11 // pred_check_branch
          %211 = sbr.rel (%p209) target = $region16
        $region15: #{tpu_custom_call.1} parent=11 // pred_region
          _
        $region16: #{tpu_custom_call.1} parent=11 // pred_fallthru
          _
        // Predicated region
        $region17: #{tpu_custom_call.1} parent=11 // pred_check
          %p212 = pneg %p84
        $region18: #{tpu_custom_call.1} parent=11 // pred_check_branch
          %214 = sbr.rel (%p212) target = $region20
        $region19: #{tpu_custom_call.1} parent=11 // pred_region
          _
        $region20: #{tpu_custom_call.1} parent=11 // pred_fallthru
          _
        // Predicated region
        $region21: #{tpu_custom_call.1} parent=11 // pred_check
          %p215 = pneg %p105
        $region22: #{tpu_custom_call.1} parent=11 // pred_check_branch
          %217 = sbr.rel (%p215) target = $region24
        $region23: #{tpu_custom_call.1} parent=11 // pred_region
          %219 = vsyncadd [#allocation4], 0
          %s220 = sshll.u32 %s3, 4
          %s221 = int_to_ptr.hbm [resolvable:$true] %s220
          %s222 = sshll.u32 [#allocation3], 4
          %s223 = int_to_ptr.vmem [resolvable:$true] %s222
          %228 = dma.hbm_to_vmem [thread:$0]  %s221, 4096, %s223, [#allocation4], 128, 128, 8
        $region24: #{tpu_custom_call.1} parent=11 // pred_fallthru
          _
        // Predicated region
        $region25: #{tpu_custom_call.1} parent=11 // pred_check
          %p229 = pneg %p126
        $region26: #{tpu_custom_call.1} parent=11 // pred_check_branch
          %231 = sbr.rel (%p229) target = $region28
        $region27: #{tpu_custom_call.1} parent=11 // pred_region
          _
        $region28: #{tpu_custom_call.1} parent=11 // pred_fallthru
          _
        // Predicated region
        $region29: #{tpu_custom_call.1} parent=11 // pred_check
          %p232 = pneg %p147
        $region30: #{tpu_custom_call.1} parent=11 // pred_check_branch
          %234 = sbr.rel (%p232) target = $region32
        $region31: #{tpu_custom_call.1} parent=11 // pred_region
          _
        $region32: #{tpu_custom_call.1} parent=11 // pred_fallthru
          _
        // Predicated region
        $region33: #{tpu_custom_call.1} parent=11 // pred_check
          %p235 = pneg %p168
        $region34: #{tpu_custom_call.1} parent=11 // pred_check_branch
          %237 = sbr.rel (%p235) target = $region36
        $region35: #{tpu_custom_call.1} parent=11 // pred_region
          _
        $region36: #{tpu_custom_call.1} parent=11 // pred_fallthru
          _
      $region12: #{tpu_custom_call.1} parent=5 // pred_fallthru
        _
      %p238 = scmp.lt.s32.totalorder %s16, 2
      // Predicated region
      $region37: #{tpu_custom_call.1} parent=5 // pred_check
        %p239 = pneg %p238
      $region38: #{tpu_custom_call.1} parent=5 // pred_check_branch
        %241 = sbr.rel (%p239) target = $region40
      $region39: #{tpu_custom_call.1} parent=5 // pred_region
        // Predicated region
        $region41: #{tpu_custom_call.1} parent=39 // pred_check
          %p242 = pneg %p36
        $region42: #{tpu_custom_call.1} parent=39 // pred_check_branch
          %244 = sbr.rel (%p242) target = $region44
        $region43: #{tpu_custom_call.1} parent=39 // pred_region
          %s245 = smul.u32 4, %s16
          %p246 = scmp.lt.s32.totalorder %s245, 7
          %s247 = scalar_select %p246, %s245, 7
          %s248 = smul.addr %s247, 8
          %s249 = scalar_lea.vmem %s0, %s248
          %s250 = smul.u32 4, %s16
        $region44: #{tpu_custom_call.1} parent=39 // pred_fallthru
          _
      $region40: #{tpu_custom_call.1} parent=5 // pred_fallthru
        _
      %p251 = scmp.le.s32.totalorder 1, %s16
      %p252 = scmp.lt.s32.totalorder %s16, 3
      %p253 = pnand %p251, %p252
      %p254 = pneg %p253
      // Predicated region
      $region45: #{tpu_custom_call.1} parent=5 // pred_check
        _
      $region46: #{tpu_custom_call.1} parent=5 // pred_check_branch
        %256 = sbr.rel (%p253) target = $region48
      $region47: #{tpu_custom_call.1} parent=5 // pred_region
        %s257 = ssub.s32 %s16, 1
        // Predicated region
        $region49: #{tpu_custom_call.1} parent=47 // pred_check
          %p258 = pneg %p105
        $region50: #{tpu_custom_call.1} parent=47 // pred_check_branch
          %260 = sbr.rel (%p258) target = $region52
        $region51: #{tpu_custom_call.1} parent=47 // pred_region
          %262 = dma.done [#allocation4], 4096
        $region52: #{tpu_custom_call.1} parent=47 // pred_fallthru
          _
        %s263 = smul.u32 4, %s21
        %p264 = scmp.lt.s32.totalorder %s263, 7
        %s265 = scalar_select %p264, %s263, 7
        %s266 = smul.addr %s265, 8
        %s267 = scalar_lea.vmem %s0, %s266
        %p268 = pneg %p42
        %p269 = pneg %p39
        %p270 = pneg %p63
        %p271 = pneg %p60
        %p272 = pneg %p84
        %p273 = pneg %p81
        %p274 = pneg %p105
        %p275 = pneg %p102
        %p276 = pneg %p126
        %p277 = pneg %p123
        %p278 = pneg %p147
        %p279 = pneg %p144
        %p280 = pneg %p168
        %p281 = pneg %p165
        %p282 = pneg %p194
        %p283 = pneg %p191
        %s284 = smul.u32 4, %s21
        %p285 = scmp.lt.s32.totalorder %s284, 7
        %s286 = scalar_select %p285, %s284, 7
        %s287 = smul.addr %s286, 8
        %s288 = scalar_lea.vmem %s7, %s287
        %s289 = smul.u32 4, %s21
        %p290 = scmp.lt.s32.totalorder %s289, 7
        %s291 = scalar_select %p290, %s289, 7
        %s292 = smul.addr %s291, 8
        %s293 = scalar_lea.vmem %s0, %s292
        %s294 = smul.u32 4, %s21
        %s295 = smul.u32 4, %s21
        %p296 = scmp.lt.s32.totalorder %s295, 7
        %s297 = scalar_select %p296, %s295, 7
        %s298 = smul.addr %s297, 8
        %s299 = scalar_lea.vmem %s7, %s298
        %s300 = smul.u32 4, %s21
        %v301 = vld [vmem:[%s293] sm:$0xff]
        %v302 = vld [vmem:[%s293 + $0x8] sm:$0xff]
        %v303 = vld [vmem:[%s293 + $0x10] sm:$0xff]
        %v304 = vld [vmem:[%s293 + $0x18] sm:$0xff]
        %v305 = vld [vmem:[%s1] sm:$0xf]
        %v306 = vld [vmem:[%s2] sm:$0x1]
        %v308 = vperm.slane %v306, 0
        %vm310 = vcmask 31744
        %v312 = vsel %vm310, %v301, 0
        %v315 = vsel %vm310, %v302, 0
        %v318 = vsel %vm310, %v303, 0
        %v321 = vsel %vm310, %v304, 0
        %vm323 = vcmask 1043456
        %v325 = vsel %vm323, %v305, 0
        %327 = vmatpush.msra.mxu0 0.0
        %328 = vmatpush.msra.mxu0 0.0
        %329 = vmatpush.msra.mxu0 0.0
        %330 = vmatpush.msra.mxu0 0.0
        %331 = vmatpush.msra.mxu0 0.0
        %332 = vmatpush.msra.mxu0 0.0
        %333 = vmatpush.msra.mxu0 0.0
        %334 = vmatpush.msra.mxu0 0.0
        %335 = vmatpush.msra.mxu0 0.0
        %336 = vmatpush.msra.mxu0 0.0
        %337 = vmatpush.msra.mxu0 0.0
        %338 = vmatpush.msra.mxu0 0.0
        %339 = vmatpush.msra.mxu0 0.0
        %340 = vmatpush.msra.mxu0 0.0
        %341 = vmatpush.msra.mxu0 0.0
        %342 = vmatpush.msra.mxu0 %v325
        %343 = vmatmul.f32.gmra.mxu0 %v312
        %v344 = vpop.f32.mrf.mxu0
        %v345 = vadd.f32 %v308, %v344
        %346 = vmatmul.f32.gmra.mxu0 %v315
        %v347 = vpop.f32.mrf.mxu0
        %v348 = vadd.f32 %v308, %v347
        %349 = vmatmul.f32.gmra.mxu0 %v318
        %v350 = vpop.f32.mrf.mxu0
        %v351 = vadd.f32 %v308, %v350
        %352 = vmatmul.f32.gmra.mxu0 %v321
        %v353 = vpop.f32.mrf.mxu0
        %v354 = vadd.f32 %v308, %v353
        %355 = vdwg.mxu0
        %v356 = vmax.f32 %v345, 0.0
        %v357 = vmax.f32 %v348, 0.0
        %v358 = vmax.f32 %v351, 0.0
        %v359 = vmax.f32 %v354, 0.0
        %v360 = vld [vmem:[#allocation3] sm:$0xff]
        %v361 = vld [vmem:[#allocation3 + $0x8] sm:$0xff]
        %v362 = vld [vmem:[#allocation3 + $0x10] sm:$0xff]
        %v363 = vld [vmem:[#allocation3 + $0x18] sm:$0xff]
        %v364 = vld [vmem:[#allocation3 + $0x20] sm:$0xff]
        %v365 = vld [vmem:[#allocation3 + $0x28] sm:$0xff]
        %v366 = vld [vmem:[#allocation3 + $0x30] sm:$0xff]
        %v367 = vld [vmem:[#allocation3 + $0x38] sm:$0xff]
        %v368 = vld [vmem:[%s4] sm:$0x1]
        %v370 = vperm.slane %v368, 0
        %vm372 = vcmask 523264
        %v374 = vsel %vm372, %v356, 0
        %v377 = vsel %vm372, %v357, 0
        %v380 = vsel %vm372, %v358, 0
        %v383 = vsel %vm372, %v359, 0
        %385 = vmatpush.msra.mxu0 0.0
        %386 = vmatpush.msra.mxu0 0.0
        %387 = vmatpush.msra.mxu0 0.0
        %388 = vmatpush.msra.mxu0 0.0
        %389 = vmatpush.msra.mxu0 0.0
        %390 = vmatpush.msra.mxu0 0.0
        %391 = vmatpush.msra.mxu0 0.0
        %392 = vmatpush.msra.mxu0 0.0
        %393 = vmatpush.msra.mxu0 %v367
        %394 = vmatpush.msra.mxu0 %v366
        %395 = vmatpush.msra.mxu0 %v365
        %396 = vmatpush.msra.mxu0 %v364
        %397 = vmatpush.msra.mxu0 %v363
        %398 = vmatpush.msra.mxu0 %v362
        %399 = vmatpush.msra.mxu0 %v361
        %400 = vmatpush.msra.mxu0 %v360
        %401 = vmatmul.f32.gmra.mxu0 %v374
        %v402 = vpop.f32.mrf.mxu0
        %v403 = vadd.f32 %v370, %v402
        %404 = vmatmul.f32.gmra.mxu0 %v377
        %v405 = vpop.f32.mrf.mxu0
        %v406 = vadd.f32 %v370, %v405
        %407 = vmatmul.f32.gmra.mxu0 %v380
        %v408 = vpop.f32.mrf.mxu0
        %v409 = vadd.f32 %v370, %v408
        %410 = vmatmul.f32.gmra.mxu0 %v383
        %v411 = vpop.f32.mrf.mxu0
        %v412 = vadd.f32 %v370, %v411
        %413 = vdwg.mxu0
        %v414 = vmax.f32 %v403, 0.0
        %v415 = vmax.f32 %v406, 0.0
        %v416 = vmax.f32 %v409, 0.0
        %v417 = vmax.f32 %v412, 0.0
        %s418 = scalar_lea.vmem [#allocation3], 64
        %v419 = vld [vmem:[%s418] sm:$0xff]
        %v420 = vld [vmem:[%s418 + $0x8] sm:$0xff]
        %v421 = vld [vmem:[%s418 + $0x10] sm:$0xff]
        %v422 = vld [vmem:[%s418 + $0x18] sm:$0xff]
        %v423 = vld [vmem:[%s418 + $0x20] sm:$0xff]
        %v424 = vld [vmem:[%s418 + $0x28] sm:$0xff]
        %v425 = vld [vmem:[%s418 + $0x30] sm:$0xff]
        %v426 = vld [vmem:[%s418 + $0x38] sm:$0xff]
        %s427 = scalar_lea.vmem %s4, 1
        %v428 = vld [vmem:[%s427] sm:$0x1]
        %v430 = vperm.slane %v428, 0
        %v433 = vsel %vm372, %v414, 0
        %v436 = vsel %vm372, %v415, 0
        %v439 = vsel %vm372, %v416, 0
        %v442 = vsel %vm372, %v417, 0
        %444 = vmatpush.msra.mxu0 0.0
        %445 = vmatpush.msra.mxu0 0.0
        %446 = vmatpush.msra.mxu0 0.0
        %447 = vmatpush.msra.mxu0 0.0
        %448 = vmatpush.msra.mxu0 0.0
        %449 = vmatpush.msra.mxu0 0.0
        %450 = vmatpush.msra.mxu0 0.0
        %451 = vmatpush.msra.mxu0 0.0
        %452 = vmatpush.msra.mxu0 %v426
        %453 = vmatpush.msra.mxu0 %v425
        %454 = vmatpush.msra.mxu0 %v424
        %455 = vmatpush.msra.mxu0 %v423
        %456 = vmatpush.msra.mxu0 %v422
        %457 = vmatpush.msra.mxu0 %v421
        %458 = vmatpush.msra.mxu0 %v420
        %459 = vmatpush.msra.mxu0 %v419
        %460 = vmatmul.f32.gmra.mxu0 %v433
        %v461 = vpop.f32.mrf.mxu0
        %v462 = vadd.f32 %v430, %v461
        %463 = vmatmul.f32.gmra.mxu0 %v436
        %v464 = vpop.f32.mrf.mxu0
        %v465 = vadd.f32 %v430, %v464
        %466 = vmatmul.f32.gmra.mxu0 %v439
        %v467 = vpop.f32.mrf.mxu0
        %v468 = vadd.f32 %v430, %v467
        %469 = vmatmul.f32.gmra.mxu0 %v442
        %v470 = vpop.f32.mrf.mxu0
        %v471 = vadd.f32 %v430, %v470
        %472 = vdwg.mxu0
        %v473 = vmax.f32 %v462, 0.0
        %v474 = vmax.f32 %v465, 0.0
        %v475 = vmax.f32 %v468, 0.0
        %v476 = vmax.f32 %v471, 0.0
        %s477 = scalar_lea.vmem [#allocation3], 128
        %v478 = vld [vmem:[%s477] sm:$0xff]
        %v479 = vld [vmem:[%s477 + $0x8] sm:$0xff]
        %v480 = vld [vmem:[%s477 + $0x10] sm:$0xff]
        %v481 = vld [vmem:[%s477 + $0x18] sm:$0xff]
        %v482 = vld [vmem:[%s477 + $0x20] sm:$0xff]
        %v483 = vld [vmem:[%s477 + $0x28] sm:$0xff]
        %v484 = vld [vmem:[%s477 + $0x30] sm:$0xff]
        %v485 = vld [vmem:[%s477 + $0x38] sm:$0xff]
        %s486 = scalar_lea.vmem %s4, 2
        %v487 = vld [vmem:[%s486] sm:$0x1]
        %v489 = vperm.slane %v487, 0
        %v492 = vsel %vm372, %v473, 0
        %v495 = vsel %vm372, %v474, 0
        %v498 = vsel %vm372, %v475, 0
        %v501 = vsel %vm372, %v476, 0
        %503 = vmatpush.msra.mxu0 0.0
        %504 = vmatpush.msra.mxu0 0.0
        %505 = vmatpush.msra.mxu0 0.0
        %506 = vmatpush.msra.mxu0 0.0
        %507 = vmatpush.msra.mxu0 0.0
        %508 = vmatpush.msra.mxu0 0.0
        %509 = vmatpush.msra.mxu0 0.0
        %510 = vmatpush.msra.mxu0 0.0
        %511 = vmatpush.msra.mxu0 %v485
        %512 = vmatpush.msra.mxu0 %v484
        %513 = vmatpush.msra.mxu0 %v483
        %514 = vmatpush.msra.mxu0 %v482
        %515 = vmatpush.msra.mxu0 %v481
        %516 = vmatpush.msra.mxu0 %v480
        %517 = vmatpush.msra.mxu0 %v479
        %518 = vmatpush.msra.mxu0 %v478
        %519 = vmatmul.f32.gmra.mxu0 %v492
        %v520 = vpop.f32.mrf.mxu0
        %v521 = vadd.f32 %v489, %v520
        %522 = vmatmul.f32.gmra.mxu0 %v495
        %v523 = vpop.f32.mrf.mxu0
        %v524 = vadd.f32 %v489, %v523
        %525 = vmatmul.f32.gmra.mxu0 %v498
        %v526 = vpop.f32.mrf.mxu0
        %v527 = vadd.f32 %v489, %v526
        %528 = vmatmul.f32.gmra.mxu0 %v501
        %v529 = vpop.f32.mrf.mxu0
        %v530 = vadd.f32 %v489, %v529
        %531 = vdwg.mxu0
        %v532 = vmax.f32 %v521, 0.0
        %v533 = vmax.f32 %v524, 0.0
        %v534 = vmax.f32 %v527, 0.0
        %v535 = vmax.f32 %v530, 0.0
        %s536 = scalar_lea.vmem [#allocation3], 192
        %v537 = vld [vmem:[%s536] sm:$0xff]
        %v538 = vld [vmem:[%s536 + $0x8] sm:$0xff]
        %v539 = vld [vmem:[%s536 + $0x10] sm:$0xff]
        %v540 = vld [vmem:[%s536 + $0x18] sm:$0xff]
        %v541 = vld [vmem:[%s536 + $0x20] sm:$0xff]
        %v542 = vld [vmem:[%s536 + $0x28] sm:$0xff]
        %v543 = vld [vmem:[%s536 + $0x30] sm:$0xff]
        %v544 = vld [vmem:[%s536 + $0x38] sm:$0xff]
        %s545 = scalar_lea.vmem %s4, 3
        %v546 = vld [vmem:[%s545] sm:$0x1]
        %v548 = vperm.slane %v546, 0
        %v551 = vsel %vm372, %v532, 0
        %v554 = vsel %vm372, %v533, 0
        %v557 = vsel %vm372, %v534, 0
        %v560 = vsel %vm372, %v535, 0
        %562 = vmatpush.msra.mxu0 0.0
        %563 = vmatpush.msra.mxu0 0.0
        %564 = vmatpush.msra.mxu0 0.0
        %565 = vmatpush.msra.mxu0 0.0
        %566 = vmatpush.msra.mxu0 0.0
        %567 = vmatpush.msra.mxu0 0.0
        %568 = vmatpush.msra.mxu0 0.0
        %569 = vmatpush.msra.mxu0 0.0
        %570 = vmatpush.msra.mxu0 %v544
        %571 = vmatpush.msra.mxu0 %v543
        %572 = vmatpush.msra.mxu0 %v542
        %573 = vmatpush.msra.mxu0 %v541
        %574 = vmatpush.msra.mxu0 %v540
        %575 = vmatpush.msra.mxu0 %v539
        %576 = vmatpush.msra.mxu0 %v538
        %577 = vmatpush.msra.mxu0 %v537
        %578 = vmatmul.f32.gmra.mxu0 %v551
        %v579 = vpop.f32.mrf.mxu0
        %v580 = vadd.f32 %v548, %v579
        %581 = vmatmul.f32.gmra.mxu0 %v554
        %v582 = vpop.f32.mrf.mxu0
        %v583 = vadd.f32 %v548, %v582
        %584 = vmatmul.f32.gmra.mxu0 %v557
        %v585 = vpop.f32.mrf.mxu0
        %v586 = vadd.f32 %v548, %v585
        %587 = vmatmul.f32.gmra.mxu0 %v560
        %v588 = vpop.f32.mrf.mxu0
        %v589 = vadd.f32 %v548, %v588
        %590 = vdwg.mxu0
        %v591 = vmax.f32 %v580, 0.0
        %v592 = vmax.f32 %v583, 0.0
        %v593 = vmax.f32 %v586, 0.0
        %v594 = vmax.f32 %v589, 0.0
        %v595 = vld [vmem:[%s5] sm:$0xff]
        %v596 = vld [vmem:[%s5 + $0x8] sm:$0xff]
        %v597 = vld [vmem:[%s5 + $0x10] sm:$0xff]
        %v598 = vld [vmem:[%s5 + $0x18] sm:$0xff]
        %v599 = vld [vmem:[%s5 + $0x20] sm:$0xff]
        %v600 = vld [vmem:[%s5 + $0x28] sm:$0xff]
        %v601 = vld [vmem:[%s5 + $0x30] sm:$0xff]
        %v602 = vld [vmem:[%s5 + $0x38] sm:$0xff]
        %603 = vxpose.xlu0.b32.start [1/16] %v595, 128
        %604 = vxpose.xlu0.b32.cont [2/16] %v596, 128
        %605 = vxpose.xlu0.b32.cont [3/16] %v597, 128
        %606 = vxpose.xlu0.b32.cont [4/16] %v598, 128
        %607 = vxpose.xlu0.b32.cont [5/16] %v599, 128
        %608 = vxpose.xlu0.b32.cont [6/16] %v600, 128
        %609 = vxpose.xlu0.b32.cont [7/16] %v601, 128
        %610 = vxpose.xlu0.b32.cont [8/16] %v602, 128
        %611 = vxpose.xlu0.b32.cont [9/16] 0.0, 128
        %612 = vxpose.xlu0.b32.cont [10/16] 0.0, 128
        %613 = vxpose.xlu0.b32.cont [11/16] 0.0, 128
        %614 = vxpose.xlu0.b32.cont [12/16] 0.0, 128
        %615 = vxpose.xlu0.b32.cont [13/16] 0.0, 128
        %616 = vxpose.xlu0.b32.cont [14/16] 0.0, 128
        %617 = vxpose.xlu0.b32.cont [15/16] 0.0, 128
        %618 = vxpose.xlu0.b32.end [16/16] 0.0, 128
        %v619 = vpop.trf.xlu0
        %v620 = vpop.trf.xlu0
        %v621 = vpop.trf.xlu0
        %v622 = vpop.trf.xlu0
        %v623 = vpop.trf.xlu0
        %v624 = vpop.trf.xlu0
        %v625 = vpop.trf.xlu0
        %v626 = vpop.trf.xlu0
        %v627 = vpop.trf.xlu0
        %v628 = vpop.trf.xlu0
        %v629 = vpop.trf.xlu0
        %v630 = vpop.trf.xlu0
        %v631 = vpop.trf.xlu0
        %v632 = vpop.trf.xlu0
        %v633 = vpop.trf.xlu0
        %v634 = vpop.trf.xlu0
        %v635 = vperm.slane %v619, 0
        %v636 = vmul.f32 %v591, %v635
        %v637 = vmul.f32 %v592, %v635
        %v638 = vmul.f32 %v593, %v635
        %v639 = vmul.f32 %v594, %v635
        %v640 = vsel %vm372, %v636, 0.0
        %641 = vadd.xlane.f32.xlu0 %v640
        %v642 = vpop.xlane.xlu0 %641
        %v643 = vsel %vm372, %v637, 0.0
        %644 = vadd.xlane.f32.xlu0 %v643
        %v645 = vpop.xlane.xlu0 %644
        %v646 = vsel %vm372, %v638, 0.0
        %647 = vadd.xlane.f32.xlu0 %v646
        %v648 = vpop.xlane.xlu0 %647
        %v649 = vsel %vm372, %v639, 0.0
        %650 = vadd.xlane.f32.xlu0 %v649
        %v651 = vpop.xlane.xlu0 %650
        %v652 = vld [vmem:[#allocation2] sm:$0x1]
        %v654 = vperm.slane %v652, 0
        %v656 = vadd.f32 %v642, %v654
        %v657 = vadd.f32 %v645, %v654
        %v658 = vadd.f32 %v648, %v654
        %v659 = vadd.f32 %v651, %v654
        %vm660 = vcmask 7168
        %661 = vst.msk [vmem:[%s299] sm:$0xff] %vm660, %v656
        %662 = vst.msk [vmem:[%s299 + $0x8] sm:$0xff] %vm660, %v657
        %663 = vst.msk [vmem:[%s299 + $0x10] sm:$0xff] %vm660, %v658
        %664 = vst.msk [vmem:[%s299 + $0x18] sm:$0xff] %vm660, %v659
        %s665 = smul.u32 4, %s21
        %p666 = scmp.lt.s32.totalorder %s665, 7
        %s667 = scalar_select %p666, %s665, 7
        %s668 = smul.addr %s667, 8
        %s669 = scalar_lea.vmem %s7, %s668
        // Predicated region
        $region53: #{tpu_custom_call.1} parent=47 // pred_check
          %p670 = pneg %p191
        $region54: #{tpu_custom_call.1} parent=47 // pred_check_branch
          %672 = sbr.rel (%p670) target = $region56
        $region55: #{tpu_custom_call.1} parent=47 // pred_region
          %s673 = smul.u32 4, %s21
        $region56: #{tpu_custom_call.1} parent=47 // pred_fallthru
          _
      $region48: #{tpu_custom_call.1} parent=5 // pred_fallthru
        _
      %p674 = scmp.le.s32.totalorder 2, %s16
      // Predicated region
      $region57: #{tpu_custom_call.1} parent=5 // pred_check
        %p675 = pneg %p674
      $region58: #{tpu_custom_call.1} parent=5 // pred_check_branch
        %677 = sbr.rel (%p675) target = $region60
      $region59: #{tpu_custom_call.1} parent=5 // pred_region
        %s678 = ssub.s32 %s16, 2
        // Predicated region
        $region61: #{tpu_custom_call.1} parent=59 // pred_check
          %p679 = pneg %p197
        $region62: #{tpu_custom_call.1} parent=59 // pred_check_branch
          %681 = sbr.rel (%p679) target = $region64
        $region63: #{tpu_custom_call.1} parent=59 // pred_region
          %s682 = smul.u32 4, %s22
          %p683 = scmp.lt.s32.totalorder %s682, 7
          %s684 = scalar_select %p683, %s682, 7
          %s685 = smul.addr %s684, 8
          %s686 = scalar_lea.vmem %s7, %s685
        $region64: #{tpu_custom_call.1} parent=59 // pred_fallthru
          _
      $region60: #{tpu_custom_call.1} parent=5 // pred_fallthru
        _
    $region6: #{tpu_custom_call.1} parent=1 // loop_footer
      %s20 = sadd.s32 1, %s16
    $region7: #{tpu_custom_call.1} parent=1 // loop_footer_branch
      %15 = sbr.rel target = $region3
    $region8: #{tpu_custom_call.1} parent=1 // loop_exit
      _
    %687 = vsyncpa [#allocation4], 1
    %s688 = scalar_lea.sflag [#allocation4], 1
    %689 = vsyncpa %s688, 1

</llo_original>
